<compile_context>
chip_gen: v7x
topology: tpu7x:2x2x1
jax: 0.10.0
libtpu: 0.0.40
codegen_flags: <defaults>
</compile_context>

<pallas_src>
import jax
import jax.numpy as jnp
import numpy as np
from jax.experimental import pallas as pl
from jax.experimental.pallas import tpu as pltpu


def mlp_kernel(x_ref, w0_ref, b0_ref, w1_ref, b1_ref, w2_ref, b2_ref, o_ref):
    x = x_ref[...]                                                   # (TB, 20)

    # dense0 + relu  (MXU matmul, f32 accumulation)
    h0 = jnp.dot(x, w0_ref[...], preferred_element_type=jnp.float32) + b0_ref[...]
    h0 = jnp.maximum(h0, 0.0)                                        # (TB, U)

    # dense1 + relu
    h1 = jnp.dot(h0, w1_ref[...], preferred_element_type=jnp.float32) + b1_ref[...]
    h1 = jnp.maximum(h1, 0.0)                                        # (TB, 10)

    # output: Linear(10 -> 1), computed directly in ROW form so the result is
    # lane-dense:  out[0, t] = sum_k w2[k] * h1[t, k] + b2.
    # lhs (1, 10) contracted with rhs (TB, 10) on their last dims (A @ B^T
    # pattern, same as q @ k.T in attention) -> (1, TB).  The batch axis lands
    # on lanes, so the store below is a dense vst instead of a 1-of-128-lane
    # masked store, and no separate (TB,1)->(1,TB) relayout is needed.
    out_row = jax.lax.dot_general(
        w2_ref[...], h1,
        dimension_numbers=(((1,), (1,)), ((), ())),
        preferred_element_type=jnp.float32,
    ) + b2_ref[...]                                                  # (1, TB)
    o_ref[...] = out_row.astype(o_ref.dtype)


def regressor_forward(x, params, block_rows=8192):
    """Forward pass of RegressorModule.

    block_rows: max batch rows per grid step.  8192-16384 amortizes the
    ~0.35 us fixed per-step pipeline overhead while fitting comfortably in
    VMEM on v5e/v6e/v7x (the (TB, 20) f32 input block lane-pads to TB*512 B
    per double-buffered copy).  Clamped to >= 8 and rounded to a multiple of
    128 when the batch is actually tiled.
    """
    w0, b0, w1, b1, w2, b2 = params
    B, F_in = x.shape
    U = w0.shape[1]
    H1 = w1.shape[1]

    # W2 as a row (1, 10) and b2 as (1, 1) for the row-form output layer.
    w2_row = jnp.reshape(w2, (1, -1))
    b2_11 = jnp.reshape(b2, (1, 1))

    block_rows = max(int(block_rows), 8)          # avoid TB == 0
    if B <= block_rows:
        TB = B                                    # whole batch in one tile
    elif block_rows >= 128:
        TB = (block_rows // 128) * 128            # lane/sublane-aligned tile
    else:
        TB = (block_rows // 8) * 8
    num_blocks = pl.cdiv(B, TB)

    # Weights / biases: same block index every grid step -> fetched once and
    # VMEM-resident across the whole batch sweep.
    def resident(a):
        return pl.BlockSpec(a.shape, lambda i: (0, 0))

    # Advisory cost: HBM-bound on reading X, not compute-bound.
    flops = 2 * B * (F_in * U + U * H1 + H1 * 1)
    bytes_accessed = 4 * (B * F_in + B + w0.size + b0.size + w1.size + b1.size
                          + w2.size + b2.size)

    out2d = pl.pallas_call(
        mlp_kernel,
        out_shape=jax.ShapeDtypeStruct((num_blocks, TB), jnp.float32),
        grid=(num_blocks,),
        in_specs=[
            pl.BlockSpec((TB, F_in), lambda i: (i, 0)),
            resident(w0), resident(b0),
            resident(w1), resident(b1),
            resident(w2_row), resident(b2_11),
        ],
        # Lane-dense output slab: one (1, TB) row per grid step.
        out_specs=pl.BlockSpec((1, TB), lambda i: (i, 0)),
        compiler_params=pltpu.CompilerParams(
            dimension_semantics=("parallel",),    # v7x: shard batch over 2 TCs
        ),
        cost_estimate=pl.CostEstimate(
            flops=int(flops), transcendentals=0,
            bytes_accessed=int(bytes_accessed)),
    )(x, w0, b0, w1, b1, w2_row, b2_11)

    # (num_blocks, TB) slab -> (B, 1); drops the padding of a ragged last tile.
    return out2d.reshape(-1)[:B].reshape(B, 1)


def init_params(key, num_units=10):
    # Deterministic PyTorch-style Linear init: U(-1/sqrt(fan_in), 1/sqrt(fan_in)).
    def linear(key, fan_in, fan_out):
        kw, kb = jax.random.split(key)
        bound = 1.0 / np.sqrt(fan_in)
        w = jax.random.uniform(kw, (fan_in, fan_out), jnp.float32, -bound, bound)
        b = jax.random.uniform(kb, (1, fan_out), jnp.float32, -bound, bound)
        return w, b

    k0, k1, k2 = jax.random.split(key, 3)
    w0, b0 = linear(k0, 20, num_units)
    w1, b1 = linear(k1, num_units, 10)
    w2, b2 = linear(k2, 10, 1)
    return (w0, b0, w1, b1, w2, b2)


def reference_forward(x, params):
    w0, b0, w1, b1, w2, b2 = params
    h0 = jnp.maximum(x @ w0 + b0, 0.0)
    h1 = jnp.maximum(h0 @ w1 + b1, 0.0)
    return h1 @ w2 + b2


if __name__ == "__main__":
    key = jax.random.PRNGKey(0)
    k_params, k_x = jax.random.split(key)

    num_units = 10
    params = init_params(k_params, num_units=num_units)

    # Test 1: single-block path (whole batch in one tile).
    x1 = jax.random.normal(k_x, (256, 20), jnp.float32)
    out1 = jax.block_until_ready(regressor_forward(x1, params))
    np.testing.assert_allclose(np.asarray(out1),
                               np.asarray(reference_forward(x1, params)),
                               rtol=1e-5, atol=1e-5)
    assert out1.shape == (256, 1)

    # Test 2: multi-block pipelined path with a ragged last tile
    # (300 rows, TB=128 -> 3 grid steps, last step partially out of bounds).
    x2 = jax.random.normal(jax.random.PRNGKey(1), (300, 20), jnp.float32)
    out2 = jax.block_until_ready(regressor_forward(x2, params, block_rows=128))
    np.testing.assert_allclose(np.asarray(out2),
                               np.asarray(reference_forward(x2, params)),
                               rtol=1e-5, atol=1e-5)
    assert out2.shape == (300, 1)

    print("KERNEL_OK")
</pallas_src>

<mosaic_0001>
module attributes {stable_mosaic.version = 11 : i64} {
  func.func @mlp_kernel(%arg0: i32, %arg1: memref<256x20xf32, #tpu.memory_space<vmem>>, %arg2: memref<20x10xf32, #tpu.memory_space<vmem>>, %arg3: memref<1x10xf32, #tpu.memory_space<vmem>>, %arg4: memref<10x10xf32, #tpu.memory_space<vmem>>, %arg5: memref<1x10xf32, #tpu.memory_space<vmem>>, %arg6: memref<1x10xf32, #tpu.memory_space<vmem>>, %arg7: memref<1x1xf32, #tpu.memory_space<vmem>>, %arg8: memref<1x256xf32, #tpu.memory_space<vmem>>) attributes {dimension_semantics = [#tpu.dimension_semantics<parallel>], iteration_bounds = array<i64: 1>, scalar_prefetch = 0 : i64, scratch_operands = 0 : i64, tpu.core_type = #tpu.core_type<tc>, window_params = [{transform_indices = @transform_0, window_bounds = array<i64: 256, 20>}, {pipeline_mode = #tpu.pipeline_mode<synchronous>, transform_indices = @transform_1, window_bounds = array<i64: 20, 10>}, {pipeline_mode = #tpu.pipeline_mode<synchronous>, transform_indices = @transform_2, window_bounds = array<i64: 1, 10>}, {pipeline_mode = #tpu.pipeline_mode<synchronous>, transform_indices = @transform_3, window_bounds = array<i64: 10, 10>}, {pipeline_mode = #tpu.pipeline_mode<synchronous>, transform_indices = @transform_4, window_bounds = array<i64: 1, 10>}, {pipeline_mode = #tpu.pipeline_mode<synchronous>, transform_indices = @transform_5, window_bounds = array<i64: 1, 10>}, {pipeline_mode = #tpu.pipeline_mode<synchronous>, transform_indices = @transform_6, window_bounds = array<i64: 1, 1>}, {transform_indices = @transform_7, window_bounds = array<i64: 1, 256>}]} {
    %c0 = arith.constant 0 : index
    %c0_0 = arith.constant 0 : index
    %0 = vector.load %arg1[%c0, %c0_0] : memref<256x20xf32, #tpu.memory_space<vmem>>, vector<256x20xf32>
    %c0_1 = arith.constant 0 : index
    %c0_2 = arith.constant 0 : index
    %1 = vector.load %arg2[%c0_1, %c0_2] : memref<20x10xf32, #tpu.memory_space<vmem>>, vector<20x10xf32>
    %cst = arith.constant dense<0.000000e+00> : vector<256x10xf32>
    %2 = tpu.matmul %0, %1, %cst {dimension_numbers = #tpu.dot_dimension_numbers<[1], [0], [0], [1], [0, 0, 1, 1], [], []>} : vector<256x20xf32>, vector<20x10xf32>, vector<256x10xf32> -> vector<256x10xf32>
    %c0_3 = arith.constant 0 : index
    %c0_4 = arith.constant 0 : index
    %3 = vector.load %arg3[%c0_3, %c0_4] : memref<1x10xf32, #tpu.memory_space<vmem>>, vector<1x10xf32>
    %4 = vector.broadcast %3 : vector<1x10xf32> to vector<256x10xf32>
    %5 = arith.addf %2, %4 : vector<256x10xf32>
    %cst_5 = arith.constant 0.000000e+00 : f32
    %6 = vector.broadcast %cst_5 : f32 to vector<256x10xf32>
    %7 = arith.maximumf %5, %6 : vector<256x10xf32>
    %c0_6 = arith.constant 0 : index
    %c0_7 = arith.constant 0 : index
    %8 = vector.load %arg4[%c0_6, %c0_7] : memref<10x10xf32, #tpu.memory_space<vmem>>, vector<10x10xf32>
    %cst_8 = arith.constant dense<0.000000e+00> : vector<256x10xf32>
    %9 = tpu.matmul %7, %8, %cst_8 {dimension_numbers = #tpu.dot_dimension_numbers<[1], [0], [0], [1], [0, 0, 1, 1], [], []>} : vector<256x10xf32>, vector<10x10xf32>, vector<256x10xf32> -> vector<256x10xf32>
    %c0_9 = arith.constant 0 : index
    %c0_10 = arith.constant 0 : index
    %10 = vector.load %arg5[%c0_9, %c0_10] : memref<1x10xf32, #tpu.memory_space<vmem>>, vector<1x10xf32>
    %11 = vector.broadcast %10 : vector<1x10xf32> to vector<256x10xf32>
    %12 = arith.addf %9, %11 : vector<256x10xf32>
    %cst_11 = arith.constant 0.000000e+00 : f32
    %13 = vector.broadcast %cst_11 : f32 to vector<256x10xf32>
    %14 = arith.maximumf %12, %13 : vector<256x10xf32>
    %c0_12 = arith.constant 0 : index
    %c0_13 = arith.constant 0 : index
    %15 = vector.load %arg6[%c0_12, %c0_13] : memref<1x10xf32, #tpu.memory_space<vmem>>, vector<1x10xf32>
    %cst_14 = arith.constant dense<0.000000e+00> : vector<1x256xf32>
    %16 = tpu.matmul %15, %14, %cst_14 {dimension_numbers = #tpu.dot_dimension_numbers<[1], [1], [0], [0], [0, 0, 1, 0], [], []>} : vector<1x10xf32>, vector<256x10xf32>, vector<1x256xf32> -> vector<1x256xf32>
    %c0_15 = arith.constant 0 : index
    %c0_16 = arith.constant 0 : index
    %17 = vector.load %arg7[%c0_15, %c0_16] : memref<1x1xf32, #tpu.memory_space<vmem>>, vector<1x1xf32>
    %18 = vector.broadcast %17 : vector<1x1xf32> to vector<1x256xf32>
    %19 = arith.addf %16, %18 : vector<1x256xf32>
    %c0_17 = arith.constant 0 : index
    %c0_18 = arith.constant 0 : index
    %20 = vector.load %arg8[%c0_17, %c0_18] : memref<1x256xf32, #tpu.memory_space<vmem>>, vector<1x256xf32>
    tpu.vector_store %arg8[%c0_17, %c0_18], %19 {strides = array<i32>} : memref<1x256xf32, #tpu.memory_space<vmem>>, vector<1x256xf32>,
    return
  }
  func.func @transform_0(%arg0: i32) -> (i32, i32) {
    %c0_i32 = arith.constant 0 : i32
    %c0_i32_0 = arith.constant 0 : i32
    return %arg0, %c0_i32 : i32, i32
  }
  func.func @transform_1(%arg0: i32) -> (i32, i32) {
    %c0_i32 = arith.constant 0 : i32
    %c0_i32_0 = arith.constant 0 : i32
    %c0_i32_1 = arith.constant 0 : i32
    return %c0_i32, %c0_i32_0 : i32, i32
  }
  func.func @transform_2(%arg0: i32) -> (i32, i32) {
    %c0_i32 = arith.constant 0 : i32
    %c0_i32_0 = arith.constant 0 : i32
    %c0_i32_1 = arith.constant 0 : i32
    return %c0_i32, %c0_i32_0 : i32, i32
  }
  func.func @transform_3(%arg0: i32) -> (i32, i32) {
    %c0_i32 = arith.constant 0 : i32
    %c0_i32_0 = arith.constant 0 : i32
    %c0_i32_1 = arith.constant 0 : i32
    return %c0_i32, %c0_i32_0 : i32, i32
  }
  func.func @transform_4(%arg0: i32) -> (i32, i32) {
    %c0_i32 = arith.constant 0 : i32
    %c0_i32_0 = arith.constant 0 : i32
    %c0_i32_1 = arith.constant 0 : i32
    return %c0_i32, %c0_i32_0 : i32, i32
  }
  func.func @transform_5(%arg0: i32) -> (i32, i32) {
    %c0_i32 = arith.constant 0 : i32
    %c0_i32_0 = arith.constant 0 : i32
    %c0_i32_1 = arith.constant 0 : i32
    return %c0_i32, %c0_i32_0 : i32, i32
  }
  func.func @transform_6(%arg0: i32) -> (i32, i32) {
    %c0_i32 = arith.constant 0 : i32
    %c0_i32_0 = arith.constant 0 : i32
    %c0_i32_1 = arith.constant 0 : i32
    return %c0_i32, %c0_i32_0 : i32, i32
  }
  func.func @transform_7(%arg0: i32) -> (i32, i32) {
    %c0_i32 = arith.constant 0 : i32
    %c0_i32_0 = arith.constant 0 : i32
    return %arg0, %c0_i32 : i32, i32
  }
}

</mosaic_0001>

<llo_original>
// kernel: tpu_custom_call.1
$region0: #{tpu_custom_call.1}
  #allocation0 [shape = 'u32[]', space=smem, size = 0x4, offset = 0x4, fixed_abs, tag = 'smem constant byte address 0x4 - core index']
  #allocation1 [shape = 'u32[144,128]{1,0:T(1,128)}', space=vmem, size = 0x12000, scoped, tag = 'internal scratch']
  #allocation2 [shape = 'f32[1,1]{1,0:T(1,128)S(1)}', space=vmem, size = 0x200, scoped, tag = 'scoped memory for tpu_custom_call.1']
  %s0 = inlined_call_operand.vmem [shape: f32[256,20], index: 0, kind: input, shape index: {}]
  %s1 = inlined_call_operand.vmem [shape: f32[20,10], index: 1, kind: input, shape index: {}]
  %s2 = inlined_call_operand.vmem [shape: f32[1,10], index: 2, kind: input, shape index: {}]
  %s3 = inlined_call_operand.vmem [shape: f32[10,10], index: 3, kind: input, shape index: {}]
  %s4 = inlined_call_operand.vmem [shape: f32[1,10], index: 4, kind: input, shape index: {}]
  %s5 = inlined_call_operand.vmem [shape: f32[1,10], index: 5, kind: input, shape index: {}]
  %s6 = inlined_call_operand.<no memory space> [shape: f32[1,1], index: 6, kind: input, shape index: {}]
  %s7 = inlined_call_operand.hbm [shape: f32[1,256], index: 7, kind: output, shape index: {}]
  %s8 = sld [smem:[#allocation0]]
  $region38: #{tpu_custom_call.1} parent=0
    _
  %s10 = ssub.s32 1, %s8
  %s11 = scalar_select 0, %s10, %s8
  %v12 = vstv %s6
  %13 = vst [vmem:[#allocation2] sm:$0x1] %v12
  $region1: #{tpu_custom_call.1} parent=0
    #allocation3 [shape = 'u8[1024]{0}', space=vmem, size = 0x400, scoped, tag = 'output window, operand 0, single buffered']
    #allocation4 [shape = 's32[1]{0}', space=sflag, size = 0x4, scoped, tag = 'scoped memory for tpu_custom_call.1']
    %14 = vsyncpa [#allocation4], 0
    // Predicated region
    $region2: #{tpu_custom_call.1} parent=1 // pred_check
      _
    $region3: #{tpu_custom_call.1} parent=1 // pred_check_branch
      %16 = sbr.rel (0) target = $region5
    $region4: #{tpu_custom_call.1} parent=1 // pred_region
      _
    $region5: #{tpu_custom_call.1} parent=1 // pred_fallthru
      _
    // Predicated region
    $region6: #{tpu_custom_call.1} parent=1 // pred_check
      _
    $region7: #{tpu_custom_call.1} parent=1 // pred_check_branch
      %18 = sbr.rel (0) target = $region9
    $region8: #{tpu_custom_call.1} parent=1 // pred_region
      _
    $region9: #{tpu_custom_call.1} parent=1 // pred_fallthru
      _
    // Predicated region
    $region10: #{tpu_custom_call.1} parent=1 // pred_check
      _
    $region11: #{tpu_custom_call.1} parent=1 // pred_check_branch
      %20 = sbr.rel (0) target = $region13
    $region12: #{tpu_custom_call.1} parent=1 // pred_region
      _
    $region13: #{tpu_custom_call.1} parent=1 // pred_fallthru
      _
    // Predicated region
    $region14: #{tpu_custom_call.1} parent=1 // pred_check
      _
    $region15: #{tpu_custom_call.1} parent=1 // pred_check_branch
      %22 = sbr.rel (0) target = $region17
    $region16: #{tpu_custom_call.1} parent=1 // pred_region
      _
    $region17: #{tpu_custom_call.1} parent=1 // pred_fallthru
      _
    // Predicated region
    $region18: #{tpu_custom_call.1} parent=1 // pred_check
      _
    $region19: #{tpu_custom_call.1} parent=1 // pred_check_branch
      %24 = sbr.rel (0) target = $region21
    $region20: #{tpu_custom_call.1} parent=1 // pred_region
      _
    $region21: #{tpu_custom_call.1} parent=1 // pred_fallthru
      _
    // Predicated region
    $region22: #{tpu_custom_call.1} parent=1 // pred_check
      _
    $region23: #{tpu_custom_call.1} parent=1 // pred_check_branch
      %26 = sbr.rel (0) target = $region25
    $region24: #{tpu_custom_call.1} parent=1 // pred_region
      _
    $region25: #{tpu_custom_call.1} parent=1 // pred_fallthru
      _
    // Predicated region
    $region26: #{tpu_custom_call.1} parent=1 // pred_check
      _
    $region27: #{tpu_custom_call.1} parent=1 // pred_check_branch
      %28 = sbr.rel (0) target = $region29
    $region28: #{tpu_custom_call.1} parent=1 // pred_region
      _
    $region29: #{tpu_custom_call.1} parent=1 // pred_fallthru
      _
    %v29 = vld [vmem:[%s0] sm:$0xff]
    %v30 = vld [vmem:[%s0 + $0x8] sm:$0xff]
    %v31 = vld [vmem:[%s0 + $0x10] sm:$0xff]
    %v32 = vld [vmem:[%s0 + $0x18] sm:$0xff]
    %v33 = vld [vmem:[%s0 + $0x20] sm:$0xff]
    %v34 = vld [vmem:[%s0 + $0x28] sm:$0xff]
    %v35 = vld [vmem:[%s0 + $0x30] sm:$0xff]
    %v36 = vld [vmem:[%s0 + $0x38] sm:$0xff]
    %v37 = vld [vmem:[%s0 + $0x40] sm:$0xff]
    %v38 = vld [vmem:[%s0 + $0x48] sm:$0xff]
    %v39 = vld [vmem:[%s0 + $0x50] sm:$0xff]
    %v40 = vld [vmem:[%s0 + $0x58] sm:$0xff]
    %v41 = vld [vmem:[%s0 + $0x60] sm:$0xff]
    %v42 = vld [vmem:[%s0 + $0x68] sm:$0xff]
    %v43 = vld [vmem:[%s0 + $0x70] sm:$0xff]
    %v44 = vld [vmem:[%s0 + $0x78] sm:$0xff]
    %v45 = vld [vmem:[%s0 + $0x80] sm:$0xff]
    %v46 = vld [vmem:[%s0 + $0x88] sm:$0xff]
    %v47 = vld [vmem:[%s0 + $0x90] sm:$0xff]
    %v48 = vld [vmem:[%s0 + $0x98] sm:$0xff]
    %v49 = vld [vmem:[%s0 + $0xa0] sm:$0xff]
    %v50 = vld [vmem:[%s0 + $0xa8] sm:$0xff]
    %v51 = vld [vmem:[%s0 + $0xb0] sm:$0xff]
    %v52 = vld [vmem:[%s0 + $0xb8] sm:$0xff]
    %v53 = vld [vmem:[%s0 + $0xc0] sm:$0xff]
    %v54 = vld [vmem:[%s0 + $0xc8] sm:$0xff]
    %v55 = vld [vmem:[%s0 + $0xd0] sm:$0xff]
    %v56 = vld [vmem:[%s0 + $0xd8] sm:$0xff]
    %v57 = vld [vmem:[%s0 + $0xe0] sm:$0xff]
    %v58 = vld [vmem:[%s0 + $0xe8] sm:$0xff]
    %v59 = vld [vmem:[%s0 + $0xf0] sm:$0xff]
    %v60 = vld [vmem:[%s0 + $0xf8] sm:$0xff]
    %v61 = vld [vmem:[%s1] sm:$0xff]
    %v62 = vld [vmem:[%s1 + $0x8] sm:$0xff]
    %v63 = vld [vmem:[%s1 + $0x10] sm:$0xf]
    %v64 = vld [vmem:[%s2] sm:$0x1]
    %v66 = vlaneseq
    %v67 = vshrl.u32 %v66, 7
    %v68 = vsub.s32 0, %v67
    %v69 = vrot.slane %v64, %v68
    %vm71 = vcmask 162816
    %v73 = vsel %vm71, %v29, 0
    %v76 = vsel %vm71, %v30, 0
    %v79 = vsel %vm71, %v31, 0
    %v82 = vsel %vm71, %v32, 0
    %v85 = vsel %vm71, %v33, 0
    %v88 = vsel %vm71, %v34, 0
    %v91 = vsel %vm71, %v35, 0
    %v94 = vsel %vm71, %v36, 0
    %v97 = vsel %vm71, %v37, 0
    %v100 = vsel %vm71, %v38, 0
    %v103 = vsel %vm71, %v39, 0
    %v106 = vsel %vm71, %v40, 0
    %v109 = vsel %vm71, %v41, 0
    %v112 = vsel %vm71, %v42, 0
    %v115 = vsel %vm71, %v43, 0
    %v118 = vsel %vm71, %v44, 0
    %v121 = vsel %vm71, %v45, 0
    %v124 = vsel %vm71, %v46, 0
    %v127 = vsel %vm71, %v47, 0
    %v130 = vsel %vm71, %v48, 0
    %v133 = vsel %vm71, %v49, 0
    %v136 = vsel %vm71, %v50, 0
    %v139 = vsel %vm71, %v51, 0
    %v142 = vsel %vm71, %v52, 0
    %v145 = vsel %vm71, %v53, 0
    %v148 = vsel %vm71, %v54, 0
    %v151 = vsel %vm71, %v55, 0
    %v154 = vsel %vm71, %v56, 0
    %v157 = vsel %vm71, %v57, 0
    %v160 = vsel %vm71, %v58, 0
    %v163 = vsel %vm71, %v59, 0
    %v166 = vsel %vm71, %v60, 0
    %vm168 = vcmask 1043456
    %v170 = vsel %vm168, %v63, 0
    %172 = vmatprep.subr.mxu0 0.0
    %173 = vmatpush1.msra.mxu0 %v61
    %174 = vmatprep.subr.mxu0 0.0
    %175 = vmatpush1.msra.mxu0 %v62
    %176 = vmatprep.subr.mxu0 0.0
    %177 = vmatpush1.msra.mxu0 %v170
    %178 = vmatprep.subr.mxu0 0.0
    %179 = vmatpush1.msra.mxu0 0.0
    %180 = vmatprep.subr.mxu0 0.0
    %181 = vmatpush1.msra.mxu0 0.0
    %182 = vmatprep.subr.mxu0 0.0
    %183 = vmatpush1.msra.mxu0 0.0
    %184 = vmatprep.subr.mxu0 0.0
    %185 = vmatpush1.msra.mxu0 0.0
    %186 = vmatprep.subr.mxu0 0.0
    %187 = vmatpush1.msra.mxu0 0.0
    %188 = vmatprep.subr.mxu0 0.0
    %189 = vmatpush1.msra.mxu0 0.0
    %190 = vmatprep.subr.mxu0 0.0
    %191 = vmatpush1.msra.mxu0 0.0
    %192 = vmatprep.subr.mxu0 0.0
    %193 = vmatpush1.msra.mxu0 0.0
    %194 = vmatprep.subr.mxu0 0.0
    %195 = vmatpush1.msra.mxu0 0.0
    %196 = vmatprep.subr.mxu0 0.0
    %197 = vmatpush1.msra.mxu0 0.0
    %198 = vmatprep.subr.mxu0 0.0
    %199 = vmatpush1.msra.mxu0 0.0
    %200 = vmatprep.subr.mxu0 0.0
    %201 = vmatpush1.msra.mxu0 0.0
    %202 = vmatprep.subr.mxu0 0.0
    %203 = vmatpush1.msra.mxu0 0.0
    %204 = vmatprep.subr.mxu0 0.0
    %205 = vmatpush1.msra.mxu0 0.0
    %206 = vmatprep.subr.mxu0 0.0
    %207 = vmatpush1.msra.mxu0 0.0
    %208 = vmatprep.subr.mxu0 0.0
    %209 = vmatpush1.msra.mxu0 0.0
    %210 = vmatprep.subr.mxu0 0.0
    %211 = vmatpush1.msra.mxu0 0.0
    %212 = vmatprep.subr.mxu0 0.0
    %213 = vmatpush1.msra.mxu0 0.0
    %214 = vmatprep.subr.mxu0 0.0
    %215 = vmatpush1.msra.mxu0 0.0
    %216 = vmatprep.subr.mxu0 0.0
    %217 = vmatpush1.msra.mxu0 0.0
    %218 = vmatprep.subr.mxu0 0.0
    %219 = vmatpush1.msra.mxu0 0.0
    %220 = vmatprep.subr.mxu0 0.0
    %221 = vmatpush1.msra.mxu0 0.0
    %222 = vmatprep.subr.mxu0 0.0
    %223 = vmatpush1.msra.mxu0 0.0
    %224 = vmatprep.subr.mxu0 0.0
    %225 = vmatpush1.msra.mxu0 0.0
    %226 = vmatprep.subr.mxu0 0.0
    %227 = vmatpush1.msra.mxu0 0.0
    %228 = vmatprep.subr.mxu0 0.0
    %229 = vmatpush1.msra.mxu0 0.0
    %230 = vmatprep.subr.mxu0 0.0
    %231 = vmatpush1.msra.mxu0 0.0
    %232 = vmatprep.subr.mxu0 0.0
    %233 = vmatpush1.msra.mxu0 0.0
    %234 = vmatprep.subr.mxu0 0.0
    %235 = vmatpush1.msra.mxu0 0.0
    %236 = vmatprep.mubr.f32.mxu0 0.0
    %237 = vmatmul.mubr.f32.gmra.mrb[0].mxu0 %v73
    %v238 = vpop.f32.mrb[0].mxu0
    %v239 = vadd.f32 %v69, %v238
    %v240 = vpop.f32.mrb[0].mxu0
    %241 = vmatprep.mubr.f32.mxu0 0.0
    %242 = vmatmul.mubr.f32.gmra.mrb[0].mxu0 %v76
    %v243 = vpop.f32.mrb[0].mxu0
    %v244 = vadd.f32 %v69, %v243
    %v245 = vpop.f32.mrb[0].mxu0
    %246 = vmatprep.mubr.f32.mxu0 0.0
    %247 = vmatmul.mubr.f32.gmra.mrb[0].mxu0 %v79
    %v248 = vpop.f32.mrb[0].mxu0
    %v249 = vadd.f32 %v69, %v248
    %v250 = vpop.f32.mrb[0].mxu0
    %251 = vmatprep.mubr.f32.mxu0 0.0
    %252 = vmatmul.mubr.f32.gmra.mrb[0].mxu0 %v82
    %v253 = vpop.f32.mrb[0].mxu0
    %v254 = vadd.f32 %v69, %v253
    %v255 = vpop.f32.mrb[0].mxu0
    %256 = vmatprep.mubr.f32.mxu0 0.0
    %257 = vmatmul.mubr.f32.gmra.mrb[0].mxu0 %v85
    %v258 = vpop.f32.mrb[0].mxu0
    %v259 = vadd.f32 %v69, %v258
    %v260 = vpop.f32.mrb[0].mxu0
    %261 = vmatprep.mubr.f32.mxu0 0.0
    %262 = vmatmul.mubr.f32.gmra.mrb[0].mxu0 %v88
    %v263 = vpop.f32.mrb[0].mxu0
    %v264 = vadd.f32 %v69, %v263
    %v265 = vpop.f32.mrb[0].mxu0
    %266 = vmatprep.mubr.f32.mxu0 0.0
    %267 = vmatmul.mubr.f32.gmra.mrb[0].mxu0 %v91
    %v268 = vpop.f32.mrb[0].mxu0
    %v269 = vadd.f32 %v69, %v268
    %v270 = vpop.f32.mrb[0].mxu0
    %271 = vmatprep.mubr.f32.mxu0 0.0
    %272 = vmatmul.mubr.f32.gmra.mrb[0].mxu0 %v94
    %v273 = vpop.f32.mrb[0].mxu0
    %v274 = vadd.f32 %v69, %v273
    %v275 = vpop.f32.mrb[0].mxu0
    %276 = vmatprep.mubr.f32.mxu0 0.0
    %277 = vmatmul.mubr.f32.gmra.mrb[0].mxu0 %v97
    %v278 = vpop.f32.mrb[0].mxu0
    %v279 = vadd.f32 %v69, %v278
    %v280 = vpop.f32.mrb[0].mxu0
    %281 = vmatprep.mubr.f32.mxu0 0.0
    %282 = vmatmul.mubr.f32.gmra.mrb[0].mxu0 %v100
    %v283 = vpop.f32.mrb[0].mxu0
    %v284 = vadd.f32 %v69, %v283
    %v285 = vpop.f32.mrb[0].mxu0
    %286 = vmatprep.mubr.f32.mxu0 0.0
    %287 = vmatmul.mubr.f32.gmra.mrb[0].mxu0 %v103
    %v288 = vpop.f32.mrb[0].mxu0
    %v289 = vadd.f32 %v69, %v288
    %v290 = vpop.f32.mrb[0].mxu0
    %291 = vmatprep.mubr.f32.mxu0 0.0
    %292 = vmatmul.mubr.f32.gmra.mrb[0].mxu0 %v106
    %v293 = vpop.f32.mrb[0].mxu0
    %v294 = vadd.f32 %v69, %v293
    %v295 = vpop.f32.mrb[0].mxu0
    %296 = vmatprep.mubr.f32.mxu0 0.0
    %297 = vmatmul.mubr.f32.gmra.mrb[0].mxu0 %v109
    %v298 = vpop.f32.mrb[0].mxu0
    %v299 = vadd.f32 %v69, %v298
    %v300 = vpop.f32.mrb[0].mxu0
    %301 = vmatprep.mubr.f32.mxu0 0.0
    %302 = vmatmul.mubr.f32.gmra.mrb[0].mxu0 %v112
    %v303 = vpop.f32.mrb[0].mxu0
    %v304 = vadd.f32 %v69, %v303
    %v305 = vpop.f32.mrb[0].mxu0
    %306 = vmatprep.mubr.f32.mxu0 0.0
    %307 = vmatmul.mubr.f32.gmra.mrb[0].mxu0 %v115
    %v308 = vpop.f32.mrb[0].mxu0
    %v309 = vadd.f32 %v69, %v308
    %v310 = vpop.f32.mrb[0].mxu0
    %311 = vmatprep.mubr.f32.mxu0 0.0
    %312 = vmatmul.mubr.f32.gmra.mrb[0].mxu0 %v118
    %v313 = vpop.f32.mrb[0].mxu0
    %v314 = vadd.f32 %v69, %v313
    %v315 = vpop.f32.mrb[0].mxu0
    %316 = vmatprep.mubr.f32.mxu0 0.0
    %317 = vmatmul.mubr.f32.gmra.mrb[0].mxu0 %v121
    %v318 = vpop.f32.mrb[0].mxu0
    %v319 = vadd.f32 %v69, %v318
    %v320 = vpop.f32.mrb[0].mxu0
    %321 = vmatprep.mubr.f32.mxu0 0.0
    %322 = vmatmul.mubr.f32.gmra.mrb[0].mxu0 %v124
    %v323 = vpop.f32.mrb[0].mxu0
    %v324 = vadd.f32 %v69, %v323
    %v325 = vpop.f32.mrb[0].mxu0
    %326 = vmatprep.mubr.f32.mxu0 0.0
    %327 = vmatmul.mubr.f32.gmra.mrb[0].mxu0 %v127
    %v328 = vpop.f32.mrb[0].mxu0
    %v329 = vadd.f32 %v69, %v328
    %v330 = vpop.f32.mrb[0].mxu0
    %331 = vmatprep.mubr.f32.mxu0 0.0
    %332 = vmatmul.mubr.f32.gmra.mrb[0].mxu0 %v130
    %v333 = vpop.f32.mrb[0].mxu0
    %v334 = vadd.f32 %v69, %v333
    %v335 = vpop.f32.mrb[0].mxu0
    %336 = vmatprep.mubr.f32.mxu0 0.0
    %337 = vmatmul.mubr.f32.gmra.mrb[0].mxu0 %v133
    %v338 = vpop.f32.mrb[0].mxu0
    %v339 = vadd.f32 %v69, %v338
    %v340 = vpop.f32.mrb[0].mxu0
    %341 = vmatprep.mubr.f32.mxu0 0.0
    %342 = vmatmul.mubr.f32.gmra.mrb[0].mxu0 %v136
    %v343 = vpop.f32.mrb[0].mxu0
    %v344 = vadd.f32 %v69, %v343
    %v345 = vpop.f32.mrb[0].mxu0
    %346 = vmatprep.mubr.f32.mxu0 0.0
    %347 = vmatmul.mubr.f32.gmra.mrb[0].mxu0 %v139
    %v348 = vpop.f32.mrb[0].mxu0
    %v349 = vadd.f32 %v69, %v348
    %v350 = vpop.f32.mrb[0].mxu0
    %351 = vmatprep.mubr.f32.mxu0 0.0
    %352 = vmatmul.mubr.f32.gmra.mrb[0].mxu0 %v142
    %v353 = vpop.f32.mrb[0].mxu0
    %v354 = vadd.f32 %v69, %v353
    %v355 = vpop.f32.mrb[0].mxu0
    %356 = vmatprep.mubr.f32.mxu0 0.0
    %357 = vmatmul.mubr.f32.gmra.mrb[0].mxu0 %v145
    %v358 = vpop.f32.mrb[0].mxu0
    %v359 = vadd.f32 %v69, %v358
    %v360 = vpop.f32.mrb[0].mxu0
    %361 = vmatprep.mubr.f32.mxu0 0.0
    %362 = vmatmul.mubr.f32.gmra.mrb[0].mxu0 %v148
    %v363 = vpop.f32.mrb[0].mxu0
    %v364 = vadd.f32 %v69, %v363
    %v365 = vpop.f32.mrb[0].mxu0
    %366 = vmatprep.mubr.f32.mxu0 0.0
    %367 = vmatmul.mubr.f32.gmra.mrb[0].mxu0 %v151
    %v368 = vpop.f32.mrb[0].mxu0
    %v369 = vadd.f32 %v69, %v368
    %v370 = vpop.f32.mrb[0].mxu0
    %371 = vmatprep.mubr.f32.mxu0 0.0
    %372 = vmatmul.mubr.f32.gmra.mrb[0].mxu0 %v154
    %v373 = vpop.f32.mrb[0].mxu0
    %v374 = vadd.f32 %v69, %v373
    %v375 = vpop.f32.mrb[0].mxu0
    %376 = vmatprep.mubr.f32.mxu0 0.0
    %377 = vmatmul.mubr.f32.gmra.mrb[0].mxu0 %v157
    %v378 = vpop.f32.mrb[0].mxu0
    %v379 = vadd.f32 %v69, %v378
    %v380 = vpop.f32.mrb[0].mxu0
    %381 = vmatprep.mubr.f32.mxu0 0.0
    %382 = vmatmul.mubr.f32.gmra.mrb[0].mxu0 %v160
    %v383 = vpop.f32.mrb[0].mxu0
    %v384 = vadd.f32 %v69, %v383
    %v385 = vpop.f32.mrb[0].mxu0
    %386 = vmatprep.mubr.f32.mxu0 0.0
    %387 = vmatmul.mubr.f32.gmra.mrb[0].mxu0 %v163
    %v388 = vpop.f32.mrb[0].mxu0
    %v389 = vadd.f32 %v69, %v388
    %v390 = vpop.f32.mrb[0].mxu0
    %391 = vmatprep.mubr.f32.mxu0 0.0
    %392 = vmatmul.mubr.f32.gmra.mrb[0].mxu0 %v166
    %v393 = vpop.f32.mrb[0].mxu0
    %v394 = vadd.f32 %v69, %v393
    %v395 = vpop.f32.mrb[0].mxu0
    %396 = vdwg.mxu0
    %v397 = vmax.f32 %v239, 0.0
    %v398 = vmax.f32 %v244, 0.0
    %v399 = vmax.f32 %v249, 0.0
    %v400 = vmax.f32 %v254, 0.0
    %v401 = vmax.f32 %v259, 0.0
    %v402 = vmax.f32 %v264, 0.0
    %v403 = vmax.f32 %v269, 0.0
    %v404 = vmax.f32 %v274, 0.0
    %v405 = vmax.f32 %v279, 0.0
    %v406 = vmax.f32 %v284, 0.0
    %v407 = vmax.f32 %v289, 0.0
    %v408 = vmax.f32 %v294, 0.0
    %v409 = vmax.f32 %v299, 0.0
    %v410 = vmax.f32 %v304, 0.0
    %v411 = vmax.f32 %v309, 0.0
    %v412 = vmax.f32 %v314, 0.0
    %v413 = vmax.f32 %v319, 0.0
    %v414 = vmax.f32 %v324, 0.0
    %v415 = vmax.f32 %v329, 0.0
    %v416 = vmax.f32 %v334, 0.0
    %v417 = vmax.f32 %v339, 0.0
    %v418 = vmax.f32 %v344, 0.0
    %v419 = vmax.f32 %v349, 0.0
    %v420 = vmax.f32 %v354, 0.0
    %v421 = vmax.f32 %v359, 0.0
    %v422 = vmax.f32 %v364, 0.0
    %v423 = vmax.f32 %v369, 0.0
    %v424 = vmax.f32 %v374, 0.0
    %v425 = vmax.f32 %v379, 0.0
    %v426 = vmax.f32 %v384, 0.0
    %v427 = vmax.f32 %v389, 0.0
    %v428 = vmax.f32 %v394, 0.0
    %v429 = vld [vmem:[%s3] sm:$0xff]
    %v430 = vld [vmem:[%s3 + $0x8] sm:$0x3]
    %v431 = vld [vmem:[%s4] sm:$0x1]
    %v433 = vlaneseq
    %v434 = vshrl.u32 %v433, 7
    %v435 = vsub.s32 0, %v434
    %v436 = vrot.slane %v431, %v435
    %vm438 = vcmask 80896
    %v440 = vsel %vm438, %v397, 0
    %v443 = vsel %vm438, %v398, 0
    %v446 = vsel %vm438, %v399, 0
    %v449 = vsel %vm438, %v400, 0
    %v452 = vsel %vm438, %v401, 0
    %v455 = vsel %vm438, %v402, 0
    %v458 = vsel %vm438, %v403, 0
    %v461 = vsel %vm438, %v404, 0
    %v464 = vsel %vm438, %v405, 0
    %v467 = vsel %vm438, %v406, 0
    %v470 = vsel %vm438, %v407, 0
    %v473 = vsel %vm438, %v408, 0
    %v476 = vsel %vm438, %v409, 0
    %v479 = vsel %vm438, %v410, 0
    %v482 = vsel %vm438, %v411, 0
    %v485 = vsel %vm438, %v412, 0
    %v488 = vsel %vm438, %v413, 0
    %v491 = vsel %vm438, %v414, 0
    %v494 = vsel %vm438, %v415, 0
    %v497 = vsel %vm438, %v416, 0
    %v500 = vsel %vm438, %v417, 0
    %v503 = vsel %vm438, %v418, 0
    %v506 = vsel %vm438, %v419, 0
    %v509 = vsel %vm438, %v420, 0
    %v512 = vsel %vm438, %v421, 0
    %v515 = vsel %vm438, %v422, 0
    %v518 = vsel %vm438, %v423, 0
    %v521 = vsel %vm438, %v424, 0
    %v524 = vsel %vm438, %v425, 0
    %v527 = vsel %vm438, %v426, 0
    %v530 = vsel %vm438, %v427, 0
    %v533 = vsel %vm438, %v428, 0
    %vm535 = vcmask 1041408
    %v537 = vsel %vm535, %v430, 0
    %539 = vmatprep.subr.mxu0 0.0
    %540 = vmatpush1.msra.mxu0 %v429
    %541 = vmatprep.subr.mxu0 0.0
    %542 = vmatpush1.msra.mxu0 %v537
    %543 = vmatprep.subr.mxu0 0.0
    %544 = vmatpush1.msra.mxu0 0.0
    %545 = vmatprep.subr.mxu0 0.0
    %546 = vmatpush1.msra.mxu0 0.0
    %547 = vmatprep.subr.mxu0 0.0
    %548 = vmatpush1.msra.mxu0 0.0
    %549 = vmatprep.subr.mxu0 0.0
    %550 = vmatpush1.msra.mxu0 0.0
    %551 = vmatprep.subr.mxu0 0.0
    %552 = vmatpush1.msra.mxu0 0.0
    %553 = vmatprep.subr.mxu0 0.0
    %554 = vmatpush1.msra.mxu0 0.0
    %555 = vmatprep.subr.mxu0 0.0
    %556 = vmatpush1.msra.mxu0 0.0
    %557 = vmatprep.subr.mxu0 0.0
    %558 = vmatpush1.msra.mxu0 0.0
    %559 = vmatprep.subr.mxu0 0.0
    %560 = vmatpush1.msra.mxu0 0.0
    %561 = vmatprep.subr.mxu0 0.0
    %562 = vmatpush1.msra.mxu0 0.0
    %563 = vmatprep.subr.mxu0 0.0
    %564 = vmatpush1.msra.mxu0 0.0
    %565 = vmatprep.subr.mxu0 0.0
    %566 = vmatpush1.msra.mxu0 0.0
    %567 = vmatprep.subr.mxu0 0.0
    %568 = vmatpush1.msra.mxu0 0.0
    %569 = vmatprep.subr.mxu0 0.0
    %570 = vmatpush1.msra.mxu0 0.0
    %571 = vmatprep.subr.mxu0 0.0
    %572 = vmatpush1.msra.mxu0 0.0
    %573 = vmatprep.subr.mxu0 0.0
    %574 = vmatpush1.msra.mxu0 0.0
    %575 = vmatprep.subr.mxu0 0.0
    %576 = vmatpush1.msra.mxu0 0.0
    %577 = vmatprep.subr.mxu0 0.0
    %578 = vmatpush1.msra.mxu0 0.0
    %579 = vmatprep.subr.mxu0 0.0
    %580 = vmatpush1.msra.mxu0 0.0
    %581 = vmatprep.subr.mxu0 0.0
    %582 = vmatpush1.msra.mxu0 0.0
    %583 = vmatprep.subr.mxu0 0.0
    %584 = vmatpush1.msra.mxu0 0.0
    %585 = vmatprep.subr.mxu0 0.0
    %586 = vmatpush1.msra.mxu0 0.0
    %587 = vmatprep.subr.mxu0 0.0
    %588 = vmatpush1.msra.mxu0 0.0
    %589 = vmatprep.subr.mxu0 0.0
    %590 = vmatpush1.msra.mxu0 0.0
    %591 = vmatprep.subr.mxu0 0.0
    %592 = vmatpush1.msra.mxu0 0.0
    %593 = vmatprep.subr.mxu0 0.0
    %594 = vmatpush1.msra.mxu0 0.0
    %595 = vmatprep.subr.mxu0 0.0
    %596 = vmatpush1.msra.mxu0 0.0
    %597 = vmatprep.subr.mxu0 0.0
    %598 = vmatpush1.msra.mxu0 0.0
    %599 = vmatprep.subr.mxu0 0.0
    %600 = vmatpush1.msra.mxu0 0.0
    %601 = vmatprep.subr.mxu0 0.0
    %602 = vmatpush1.msra.mxu0 0.0
    %603 = vmatprep.mubr.f32.mxu0 0.0
    %604 = vmatmul.mubr.f32.gmra.mrb[0].mxu0 %v440
    %v605 = vpop.f32.mrb[0].mxu0
    %v606 = vadd.f32 %v436, %v605
    %v607 = vpop.f32.mrb[0].mxu0
    %608 = vmatprep.mubr.f32.mxu0 0.0
    %609 = vmatmul.mubr.f32.gmra.mrb[0].mxu0 %v443
    %v610 = vpop.f32.mrb[0].mxu0
    %v611 = vadd.f32 %v436, %v610
    %v612 = vpop.f32.mrb[0].mxu0
    %613 = vmatprep.mubr.f32.mxu0 0.0
    %614 = vmatmul.mubr.f32.gmra.mrb[0].mxu0 %v446
    %v615 = vpop.f32.mrb[0].mxu0
    %v616 = vadd.f32 %v436, %v615
    %v617 = vpop.f32.mrb[0].mxu0
    %618 = vmatprep.mubr.f32.mxu0 0.0
    %619 = vmatmul.mubr.f32.gmra.mrb[0].mxu0 %v449
    %v620 = vpop.f32.mrb[0].mxu0
    %v621 = vadd.f32 %v436, %v620
    %v622 = vpop.f32.mrb[0].mxu0
    %623 = vmatprep.mubr.f32.mxu0 0.0
    %624 = vmatmul.mubr.f32.gmra.mrb[0].mxu0 %v452
    %v625 = vpop.f32.mrb[0].mxu0
    %v626 = vadd.f32 %v436, %v625
    %v627 = vpop.f32.mrb[0].mxu0
    %628 = vmatprep.mubr.f32.mxu0 0.0
    %629 = vmatmul.mubr.f32.gmra.mrb[0].mxu0 %v455
    %v630 = vpop.f32.mrb[0].mxu0
    %v631 = vadd.f32 %v436, %v630
    %v632 = vpop.f32.mrb[0].mxu0
    %633 = vmatprep.mubr.f32.mxu0 0.0
    %634 = vmatmul.mubr.f32.gmra.mrb[0].mxu0 %v458
    %v635 = vpop.f32.mrb[0].mxu0
    %v636 = vadd.f32 %v436, %v635
    %v637 = vpop.f32.mrb[0].mxu0
    %638 = vmatprep.mubr.f32.mxu0 0.0
    %639 = vmatmul.mubr.f32.gmra.mrb[0].mxu0 %v461
    %v640 = vpop.f32.mrb[0].mxu0
    %v641 = vadd.f32 %v436, %v640
    %v642 = vpop.f32.mrb[0].mxu0
    %643 = vmatprep.mubr.f32.mxu0 0.0
    %644 = vmatmul.mubr.f32.gmra.mrb[0].mxu0 %v464
    %v645 = vpop.f32.mrb[0].mxu0
    %v646 = vadd.f32 %v436, %v645
    %v647 = vpop.f32.mrb[0].mxu0
    %648 = vmatprep.mubr.f32.mxu0 0.0
    %649 = vmatmul.mubr.f32.gmra.mrb[0].mxu0 %v467
    %v650 = vpop.f32.mrb[0].mxu0
    %v651 = vadd.f32 %v436, %v650
    %v652 = vpop.f32.mrb[0].mxu0
    %653 = vmatprep.mubr.f32.mxu0 0.0
    %654 = vmatmul.mubr.f32.gmra.mrb[0].mxu0 %v470
    %v655 = vpop.f32.mrb[0].mxu0
    %v656 = vadd.f32 %v436, %v655
    %v657 = vpop.f32.mrb[0].mxu0
    %658 = vmatprep.mubr.f32.mxu0 0.0
    %659 = vmatmul.mubr.f32.gmra.mrb[0].mxu0 %v473
    %v660 = vpop.f32.mrb[0].mxu0
    %v661 = vadd.f32 %v436, %v660
    %v662 = vpop.f32.mrb[0].mxu0
    %663 = vmatprep.mubr.f32.mxu0 0.0
    %664 = vmatmul.mubr.f32.gmra.mrb[0].mxu0 %v476
    %v665 = vpop.f32.mrb[0].mxu0
    %v666 = vadd.f32 %v436, %v665
    %v667 = vpop.f32.mrb[0].mxu0
    %668 = vmatprep.mubr.f32.mxu0 0.0
    %669 = vmatmul.mubr.f32.gmra.mrb[0].mxu0 %v479
    %v670 = vpop.f32.mrb[0].mxu0
    %v671 = vadd.f32 %v436, %v670
    %v672 = vpop.f32.mrb[0].mxu0
    %673 = vmatprep.mubr.f32.mxu0 0.0
    %674 = vmatmul.mubr.f32.gmra.mrb[0].mxu0 %v482
    %v675 = vpop.f32.mrb[0].mxu0
    %v676 = vadd.f32 %v436, %v675
    %v677 = vpop.f32.mrb[0].mxu0
    %678 = vmatprep.mubr.f32.mxu0 0.0
    %679 = vmatmul.mubr.f32.gmra.mrb[0].mxu0 %v485
    %v680 = vpop.f32.mrb[0].mxu0
    %v681 = vadd.f32 %v436, %v680
    %v682 = vpop.f32.mrb[0].mxu0
    %683 = vmatprep.mubr.f32.mxu0 0.0
    %684 = vmatmul.mubr.f32.gmra.mrb[0].mxu0 %v488
    %v685 = vpop.f32.mrb[0].mxu0
    %v686 = vadd.f32 %v436, %v685
    %v687 = vpop.f32.mrb[0].mxu0
    %688 = vmatprep.mubr.f32.mxu0 0.0
    %689 = vmatmul.mubr.f32.gmra.mrb[0].mxu0 %v491
    %v690 = vpop.f32.mrb[0].mxu0
    %v691 = vadd.f32 %v436, %v690
    %v692 = vpop.f32.mrb[0].mxu0
    %693 = vmatprep.mubr.f32.mxu0 0.0
    %694 = vmatmul.mubr.f32.gmra.mrb[0].mxu0 %v494
    %v695 = vpop.f32.mrb[0].mxu0
    %v696 = vadd.f32 %v436, %v695
    %v697 = vpop.f32.mrb[0].mxu0
    %698 = vmatprep.mubr.f32.mxu0 0.0
    %699 = vmatmul.mubr.f32.gmra.mrb[0].mxu0 %v497
    %v700 = vpop.f32.mrb[0].mxu0
    %v701 = vadd.f32 %v436, %v700
    %v702 = vpop.f32.mrb[0].mxu0
    %703 = vmatprep.mubr.f32.mxu0 0.0
    %704 = vmatmul.mubr.f32.gmra.mrb[0].mxu0 %v500
    %v705 = vpop.f32.mrb[0].mxu0
    %v706 = vadd.f32 %v436, %v705
    %v707 = vpop.f32.mrb[0].mxu0
    %708 = vmatprep.mubr.f32.mxu0 0.0
    %709 = vmatmul.mubr.f32.gmra.mrb[0].mxu0 %v503
    %v710 = vpop.f32.mrb[0].mxu0
    %v711 = vadd.f32 %v436, %v710
    %v712 = vpop.f32.mrb[0].mxu0
    %713 = vmatprep.mubr.f32.mxu0 0.0
    %714 = vmatmul.mubr.f32.gmra.mrb[0].mxu0 %v506
    %v715 = vpop.f32.mrb[0].mxu0
    %v716 = vadd.f32 %v436, %v715
    %v717 = vpop.f32.mrb[0].mxu0
    %718 = vmatprep.mubr.f32.mxu0 0.0
    %719 = vmatmul.mubr.f32.gmra.mrb[0].mxu0 %v509
    %v720 = vpop.f32.mrb[0].mxu0
    %v721 = vadd.f32 %v436, %v720
    %v722 = vpop.f32.mrb[0].mxu0
    %723 = vmatprep.mubr.f32.mxu0 0.0
    %724 = vmatmul.mubr.f32.gmra.mrb[0].mxu0 %v512
    %v725 = vpop.f32.mrb[0].mxu0
    %v726 = vadd.f32 %v436, %v725
    %v727 = vpop.f32.mrb[0].mxu0
    %728 = vmatprep.mubr.f32.mxu0 0.0
    %729 = vmatmul.mubr.f32.gmra.mrb[0].mxu0 %v515
    %v730 = vpop.f32.mrb[0].mxu0
    %v731 = vadd.f32 %v436, %v730
    %v732 = vpop.f32.mrb[0].mxu0
    %733 = vmatprep.mubr.f32.mxu0 0.0
    %734 = vmatmul.mubr.f32.gmra.mrb[0].mxu0 %v518
    %v735 = vpop.f32.mrb[0].mxu0
    %v736 = vadd.f32 %v436, %v735
    %v737 = vpop.f32.mrb[0].mxu0
    %738 = vmatprep.mubr.f32.mxu0 0.0
    %739 = vmatmul.mubr.f32.gmra.mrb[0].mxu0 %v521
    %v740 = vpop.f32.mrb[0].mxu0
    %v741 = vadd.f32 %v436, %v740
    %v742 = vpop.f32.mrb[0].mxu0
    %743 = vmatprep.mubr.f32.mxu0 0.0
    %744 = vmatmul.mubr.f32.gmra.mrb[0].mxu0 %v524
    %v745 = vpop.f32.mrb[0].mxu0
    %v746 = vadd.f32 %v436, %v745
    %v747 = vpop.f32.mrb[0].mxu0
    %748 = vmatprep.mubr.f32.mxu0 0.0
    %749 = vmatmul.mubr.f32.gmra.mrb[0].mxu0 %v527
    %v750 = vpop.f32.mrb[0].mxu0
    %v751 = vadd.f32 %v436, %v750
    %v752 = vpop.f32.mrb[0].mxu0
    %753 = vmatprep.mubr.f32.mxu0 0.0
    %754 = vmatmul.mubr.f32.gmra.mrb[0].mxu0 %v530
    %v755 = vpop.f32.mrb[0].mxu0
    %v756 = vadd.f32 %v436, %v755
    %v757 = vpop.f32.mrb[0].mxu0
    %758 = vmatprep.mubr.f32.mxu0 0.0
    %759 = vmatmul.mubr.f32.gmra.mrb[0].mxu0 %v533
    %v760 = vpop.f32.mrb[0].mxu0
    %v761 = vadd.f32 %v436, %v760
    %v762 = vpop.f32.mrb[0].mxu0
    %763 = vdwg.mxu0
    %v764 = vmax.f32 %v606, 0.0
    %v765 = vmax.f32 %v611, 0.0
    %v766 = vmax.f32 %v616, 0.0
    %v767 = vmax.f32 %v621, 0.0
    %v768 = vmax.f32 %v626, 0.0
    %v769 = vmax.f32 %v631, 0.0
    %v770 = vmax.f32 %v636, 0.0
    %v771 = vmax.f32 %v641, 0.0
    %v772 = vmax.f32 %v646, 0.0
    %v773 = vmax.f32 %v651, 0.0
    %v774 = vmax.f32 %v656, 0.0
    %v775 = vmax.f32 %v661, 0.0
    %v776 = vmax.f32 %v666, 0.0
    %v777 = vmax.f32 %v671, 0.0
    %v778 = vmax.f32 %v676, 0.0
    %v779 = vmax.f32 %v681, 0.0
    %v780 = vmax.f32 %v686, 0.0
    %v781 = vmax.f32 %v691, 0.0
    %v782 = vmax.f32 %v696, 0.0
    %v783 = vmax.f32 %v701, 0.0
    %v784 = vmax.f32 %v706, 0.0
    %v785 = vmax.f32 %v711, 0.0
    %v786 = vmax.f32 %v716, 0.0
    %v787 = vmax.f32 %v721, 0.0
    %v788 = vmax.f32 %v726, 0.0
    %v789 = vmax.f32 %v731, 0.0
    %v790 = vmax.f32 %v736, 0.0
    %v791 = vmax.f32 %v741, 0.0
    %v792 = vmax.f32 %v746, 0.0
    %v793 = vmax.f32 %v751, 0.0
    %v794 = vmax.f32 %v756, 0.0
    %v795 = vmax.f32 %v761, 0.0
    %v796 = vld [vmem:[%s5] sm:$0x1]
    %v797 = vld [vmem:[#allocation2] sm:$0x1]
    %799 = vset.pattern.permute.xlu0 0
    %800 = vperm.xlu0 %799, %v797
    %v801 = vpop.permute.xlu0 %800
    %v803 = vlaneseq
    %v804 = vshrl.u32 %v803, 7
    %v805 = vsub.s32 0, %v804
    %v806 = vrot.slane %v801, %v805
    %v808 = vsel %vm438, %v796, 0
    %v811 = vsel %vm438, %v764, 0
    %v814 = vsel %vm438, %v765, 0
    %v817 = vsel %vm438, %v766, 0
    %v820 = vsel %vm438, %v767, 0
    %v823 = vsel %vm438, %v768, 0
    %v826 = vsel %vm438, %v769, 0
    %v829 = vsel %vm438, %v770, 0
    %v832 = vsel %vm438, %v771, 0
    %v835 = vsel %vm438, %v772, 0
    %v838 = vsel %vm438, %v773, 0
    %v841 = vsel %vm438, %v774, 0
    %v844 = vsel %vm438, %v775, 0
    %v847 = vsel %vm438, %v776, 0
    %v850 = vsel %vm438, %v777, 0
    %v853 = vsel %vm438, %v778, 0
    %v856 = vsel %vm438, %v779, 0
    %v859 = vsel %vm438, %v780, 0
    %v862 = vsel %vm438, %v781, 0
    %v865 = vsel %vm438, %v782, 0
    %v868 = vsel %vm438, %v783, 0
    %v871 = vsel %vm438, %v784, 0
    %v874 = vsel %vm438, %v785, 0
    %v877 = vsel %vm438, %v786, 0
    %v880 = vsel %vm438, %v787, 0
    %v883 = vsel %vm438, %v788, 0
    %v886 = vsel %vm438, %v789, 0
    %v889 = vsel %vm438, %v790, 0
    %v892 = vsel %vm438, %v791, 0
    %v895 = vsel %vm438, %v792, 0
    %v898 = vsel %vm438, %v793, 0
    %v901 = vsel %vm438, %v794, 0
    %v904 = vsel %vm438, %v795, 0
    %906 = vmatprep.subr.mxu0 0.0
    %907 = vmatpush1.xpose.msra.mxu0 %v811
    %908 = vmatprep.subr.mxu0 0.0
    %909 = vmatpush1.xpose.msra.mxu0 %v814
    %910 = vmatprep.subr.mxu0 0.0
    %911 = vmatpush1.xpose.msra.mxu0 %v817
    %912 = vmatprep.subr.mxu0 0.0
    %913 = vmatpush1.xpose.msra.mxu0 %v820
    %914 = vmatprep.subr.mxu0 0.0
    %915 = vmatpush1.xpose.msra.mxu0 %v823
    %916 = vmatprep.subr.mxu0 0.0
    %917 = vmatpush1.xpose.msra.mxu0 %v826
    %918 = vmatprep.subr.mxu0 0.0
    %919 = vmatpush1.xpose.msra.mxu0 %v829
    %920 = vmatprep.subr.mxu0 0.0
    %921 = vmatpush1.xpose.msra.mxu0 %v832
    %922 = vmatprep.subr.mxu0 0.0
    %923 = vmatpush1.xpose.msra.mxu0 %v835
    %924 = vmatprep.subr.mxu0 0.0
    %925 = vmatpush1.xpose.msra.mxu0 %v838
    %926 = vmatprep.subr.mxu0 0.0
    %927 = vmatpush1.xpose.msra.mxu0 %v841
    %928 = vmatprep.subr.mxu0 0.0
    %929 = vmatpush1.xpose.msra.mxu0 %v844
    %930 = vmatprep.subr.mxu0 0.0
    %931 = vmatpush1.xpose.msra.mxu0 %v847
    %932 = vmatprep.subr.mxu0 0.0
    %933 = vmatpush1.xpose.msra.mxu0 %v850
    %934 = vmatprep.subr.mxu0 0.0
    %935 = vmatpush1.xpose.msra.mxu0 %v853
    %936 = vmatprep.subr.mxu0 0.0
    %937 = vmatpush1.xpose.msra.mxu0 %v856
    %938 = vmatprep.subr.mxu0 0.0
    %939 = vmatpush1.xpose.msra.mxu0 %v859
    %940 = vmatprep.subr.mxu0 0.0
    %941 = vmatpush1.xpose.msra.mxu0 %v862
    %942 = vmatprep.subr.mxu0 0.0
    %943 = vmatpush1.xpose.msra.mxu0 %v865
    %944 = vmatprep.subr.mxu0 0.0
    %945 = vmatpush1.xpose.msra.mxu0 %v868
    %946 = vmatprep.subr.mxu0 0.0
    %947 = vmatpush1.xpose.msra.mxu0 %v871
    %948 = vmatprep.subr.mxu0 0.0
    %949 = vmatpush1.xpose.msra.mxu0 %v874
    %950 = vmatprep.subr.mxu0 0.0
    %951 = vmatpush1.xpose.msra.mxu0 %v877
    %952 = vmatprep.subr.mxu0 0.0
    %953 = vmatpush1.xpose.msra.mxu0 %v880
    %954 = vmatprep.subr.mxu0 0.0
    %955 = vmatpush1.xpose.msra.mxu0 %v883
    %956 = vmatprep.subr.mxu0 0.0
    %957 = vmatpush1.xpose.msra.mxu0 %v886
    %958 = vmatprep.subr.mxu0 0.0
    %959 = vmatpush1.xpose.msra.mxu0 %v889
    %960 = vmatprep.subr.mxu0 0.0
    %961 = vmatpush1.xpose.msra.mxu0 %v892
    %962 = vmatprep.subr.mxu0 0.0
    %963 = vmatpush1.xpose.msra.mxu0 %v895
    %964 = vmatprep.subr.mxu0 0.0
    %965 = vmatpush1.xpose.msra.mxu0 %v898
    %966 = vmatprep.subr.mxu0 0.0
    %967 = vmatpush1.xpose.msra.mxu0 %v901
    %968 = vmatprep.subr.mxu0 0.0
    %969 = vmatpush1.xpose.msra.mxu0 %v904
    %970 = vmatprep.mubr.f32.mxu0 0.0
    %971 = vmatmul.mubr.f32.gmra.mrb[0].mxu0 %v808
    %v972 = vpop.f32.mrb[0].mxu0
    %v973 = vadd.f32 %v806, %v972
    %v974 = vpop.f32.mrb[0].mxu0
    %v975 = vadd.f32 %v806, %v974
    %976 = vdwg.mxu0
    %v979 = vcombine.low %v973, %v975
    %v981 = vunpack.c.l.s4 1966171168
    %v982 = vunpack.c.0.s8 %v981
    %v983 = vlaneseq
    %v984 = vshrl.u32 %v983, 7
    %v985 = vsub.s32 %v982, %v984
    %v986 = vrot.slane %v979, %v985
    %v988 = vunpack.c.l.s4 1966171168
    %v989 = vunpack.c.0.s8 %v988
    %v990 = vlaneseq
    %v991 = vshrl.u32 %v990, 7
    %v992 = vsub.s32 %v989, %v991
    %v993 = vrot.slane %v986, %v992
    %v995 = vlaneseq
    %vm996 = vcmp.ge.s32.totalorder %v995, 0
    %vm997 = vcmp.lt.s32.totalorder %v995, 256
    %vm998 = vmand %vm996, %vm997
    %999 = vst.msk [vmem:[#allocation3] sm:$0x3] %vm998, %v993
    // Predicated region
    $region30: #{tpu_custom_call.1} parent=1 // pred_check
      _
    $region31: #{tpu_custom_call.1} parent=1 // pred_check_branch
      %1001 = sbr.rel (0) target = $region33
    $region32: #{tpu_custom_call.1} parent=1 // pred_region
      %s1003 = ssub.s32 32, 32
      %1004 = vsyncadd [#allocation4], %s1003
      %s1006 = sshll.u32 [#allocation3], 4
      %s1007 = int_to_ptr.vmem [resolvable:$true] %s1006
      %1009 = dma.vmem_to_hbm [thread:$0]  %s1007, 32, %s7, [#allocation4]
    $region33: #{tpu_custom_call.1} parent=1 // pred_fallthru
      _
    // Predicated region
    $region34: #{tpu_custom_call.1} parent=1 // pred_check
      _
    $region35: #{tpu_custom_call.1} parent=1 // pred_check_branch
      %1011 = sbr.rel (0) target = $region37
    $region36: #{tpu_custom_call.1} parent=1 // pred_region
      %1012 = dma.done [#allocation4], 32
    $region37: #{tpu_custom_call.1} parent=1 // pred_fallthru
      _
    %1013 = vsyncpa [#allocation4], 1

</llo_original>
